<compile_context>
chip_gen: v5e
topology: v5e:2x2
jax: 0.10.0
libtpu: 0.0.40
codegen_flags: <defaults>
</compile_context>

<pallas_src>
import jax
import jax.numpy as jnp
from jax.experimental import pallas as pl
from jax.experimental.pallas import tpu as pltpu


def _round_up(v, m):
    return ((v + m - 1) // m) * m


def _num_tensorcores_per_chip():
    # v7x (and v4 megacore) shard "parallel" grid axes across 2 TensorCores;
    # v5e / v6e have a single TensorCore per chip.
    try:
        kind = jax.devices()[0].device_kind.lower()
    except Exception:
        return 1
    return 2 if ("v7" in kind or "v4" in kind) else 1


def _outconv_kernel(x_ref, w_ref, b_ref, o_ref):
    # x_ref: (nb, Cin, T)   w_ref: (Cout, Cin)   b_ref: (Cout, 1)
    # o_ref: (nb, Cout, T)
    w = w_ref[...].astype(jnp.float32)          # (Cout, Cin)
    b = b_ref[...].astype(jnp.float32)          # (Cout, 1)
    nb, cin, t = x_ref.shape
    cout = w.shape[0]

    # With a tiny Cout the MXU produces only a few useful rows per push, so
    # stay on the VPU (scalar-broadcast FMAs) well past Cin=16 in that case.
    use_vpu = (cin <= 16) or (cin <= 32 and cout <= 8)

    for bi in range(nb):                         # nb is small and static
        x = x_ref[bi].astype(jnp.float32)        # (Cin, T)
        if use_vpu:
            acc = jnp.broadcast_to(b, (cout, t))     # bias-seeded accumulator
            for ci in range(cin):
                acc = acc + w[:, ci:ci + 1] * x[ci:ci + 1, :]
        else:
            acc = jnp.dot(w, x, preferred_element_type=jnp.float32) + b
        o_ref[bi] = acc.astype(o_ref.dtype)


def outconv_pallas(x_nchw, weight, bias, *, t_hw=None):
    """1x1 conv (OutConv.forward).

    x_nchw: (N, Cin, H, W)
    weight: (Cout, Cin, 1, 1)   (PyTorch Conv2d layout)
    bias:   (Cout,)
    returns (N, Cout, H, W)
    """
    N, Cin, H, W = x_nchw.shape
    Cout = weight.shape[0]
    HW = H * W
    dtype = x_nchw.dtype
    itemsize = jnp.dtype(dtype).itemsize

    # Free contiguous reshapes -- no transposes, no extra HBM traffic.
    x3 = x_nchw.reshape(N, Cin, HW)
    w_mat = weight.reshape(Cout, Cin)
    b_col = bias.reshape(Cout, 1)

    # Keep the lane axis a multiple of 128 (pad only when needed) so blocks
    # stay lane-dense full vst instead of masked partial stores / unblocked
    # full-extent tiles.
    HWp = _round_up(HW, 128)
    if HWp != HW:
        x3 = jnp.pad(x3, ((0, 0), (0, 0), (0, HWp - HW)))

    # Real per-lane-column VMEM cost: input + output tile, each double
    # buffered, Cin/Cout rounded up to the 8-sublane VMEM granularity.
    sub_in = _round_up(Cin, 8)
    sub_out = _round_up(Cout, 8)
    per_col_bytes = (sub_in + sub_out) * itemsize * 2
    budget_bytes = 14 * 1024 * 1024      # well under the 32 MiB scoped default

    num_tc = _num_tensorcores_per_chip()

    if t_hw is None:
        max_cols = max(128, (budget_bytes // per_col_bytes) // 128 * 128)
        t_hw = min(HWp, max_cols, 32768)
        # v7x: guarantee >= 2 grid steps per TensorCore (total >= 4) so both
        # cores get work and each core still overlaps prefetch / writeback.
        if num_tc > 1:
            needed_total = 2 * num_tc
            needed_hw = -(-needed_total // N)          # ceil(needed_total / N)
            if N * pl.cdiv(HWp, t_hw) < needed_total:
                t_hw = max(128, (HWp // needed_hw) // 128 * 128)
    t_hw = min(t_hw, HWp)

    hw_tiles = pl.cdiv(HWp, t_hw)

    # Single-TC chips (v5e / v6e): fewest, largest steps.  When the whole
    # batch fits the budget, collapse N into one block so tiny problems run
    # in a single grid step (per-step overhead dominates at those sizes).
    nb = 1
    if (num_tc == 1 and N > 1 and N <= 16
            and N * per_col_bytes * t_hw <= budget_bytes):
        nb = N

    grid = (pl.cdiv(N, nb), hw_tiles)

    out3 = pl.pallas_call(
        _outconv_kernel,
        out_shape=jax.ShapeDtypeStruct((N, Cout, HWp), dtype),
        grid_spec=pltpu.PrefetchScalarGridSpec(
            num_scalar_prefetch=0,
            grid=grid,
            in_specs=[
                pl.BlockSpec((nb, Cin, t_hw), lambda n, j: (n, 0, j)),  # x tile
                pl.BlockSpec((Cout, Cin), lambda n, j: (0, 0)),         # weights (resident)
                pl.BlockSpec((Cout, 1), lambda n, j: (0, 0)),           # bias (resident)
            ],
            out_specs=pl.BlockSpec((nb, Cout, t_hw), lambda n, j: (n, 0, j)),
        ),
        compiler_params=pltpu.CompilerParams(
            dimension_semantics=("parallel", "parallel"),
            vmem_limit_bytes=32 * 1024 * 1024,
        ),
    )(x3, w_mat, b_col)

    if HWp != HW:
        out3 = out3[:, :, :HW]
    return out3.reshape(N, Cout, H, W)


if __name__ == "__main__":
    # Small shapes consistent with the module: batch=2, in_channels=4,
    # n_classes=3, spatial=16.
    N, Cin, Cout, H, W = 2, 4, 3, 16, 16

    key = jax.random.PRNGKey(0)
    kx, kw, kb = jax.random.split(key, 3)

    x = jax.random.normal(kx, (N, Cin, H, W), dtype=jnp.float32)

    # Deterministic parameter init, mimicking nn.Conv2d default
    # (uniform in [-1/sqrt(fan_in), 1/sqrt(fan_in)], fan_in = Cin*1*1).
    bound = 1.0 / (Cin ** 0.5)
    weight = jax.random.uniform(kw, (Cout, Cin, 1, 1), jnp.float32,
                                minval=-bound, maxval=bound)
    bias = jax.random.uniform(kb, (Cout,), jnp.float32,
                              minval=-bound, maxval=bound)

    y = outconv_pallas(x, weight, bias)
    jax.block_until_ready(y)

    # Reference check against plain-JAX 1x1 conv semantics.
    y_ref = jnp.einsum("nchw,oc->nohw", x, weight.reshape(Cout, Cin)) \
            + bias.reshape(1, Cout, 1, 1)
    assert y.shape == (N, Cout, H, W)
    assert jnp.allclose(y, y_ref, atol=1e-5, rtol=1e-5)

    print("KERNEL_OK")
</pallas_src>

<mosaic_0001>
module attributes {stable_mosaic.version = 11 : i64} {
  func.func @_outconv_kernel(%arg0: i32, %arg1: i32, %arg2: memref<2x4x256xf32, #tpu.memory_space<vmem>>, %arg3: memref<3x4xf32, #tpu.memory_space<vmem>>, %arg4: memref<3x1xf32, #tpu.memory_space<vmem>>, %arg5: memref<2x3x256xf32, #tpu.memory_space<vmem>>) attributes {dimension_semantics = [#tpu.dimension_semantics<parallel>, #tpu.dimension_semantics<parallel>], iteration_bounds = array<i64: 1, 1>, scalar_prefetch = 0 : i64, scratch_operands = 0 : i64, tpu.core_type = #tpu.core_type<tc>, window_params = [{transform_indices = @transform_0, window_bounds = array<i64: 2, 4, 256>}, {pipeline_mode = #tpu.pipeline_mode<synchronous>, transform_indices = @transform_1, window_bounds = array<i64: 3, 4>}, {pipeline_mode = #tpu.pipeline_mode<synchronous>, transform_indices = @transform_2, window_bounds = array<i64: 3, 1>}, {transform_indices = @transform_3, window_bounds = array<i64: 2, 3, 256>}]} {
    %c0 = arith.constant 0 : index
    %c0_0 = arith.constant 0 : index
    %0 = vector.load %arg3[%c0, %c0_0] : memref<3x4xf32, #tpu.memory_space<vmem>>, vector<3x4xf32>
    %c0_1 = arith.constant 0 : index
    %c0_2 = arith.constant 0 : index
    %1 = vector.load %arg4[%c0_1, %c0_2] : memref<3x1xf32, #tpu.memory_space<vmem>>, vector<3x1xf32>
    %c0_3 = arith.constant 0 : index
    %c0_4 = arith.constant 0 : index
    %c0_5 = arith.constant 0 : index
    %2 = vector.load %arg2[%c0_3, %c0_4, %c0_5] : memref<2x4x256xf32, #tpu.memory_space<vmem>>, vector<1x4x256xf32>
    %3 = vector.shape_cast %2 : vector<1x4x256xf32> to vector<4x256xf32>
    %4 = vector.shape_cast %1 : vector<3x1xf32> to vector<3x1xf32>
    %5 = vector.broadcast %4 : vector<3x1xf32> to vector<3x256xf32>
    %6 = vector.extract_strided_slice %0 {offsets = [0, 0], sizes = [3, 1], strides = [1, 1]} : vector<3x4xf32> to vector<3x1xf32>
    %7 = vector.extract_strided_slice %3 {offsets = [0, 0], sizes = [1, 256], strides = [1, 1]} : vector<4x256xf32> to vector<1x256xf32>
    %8 = vector.broadcast %6 : vector<3x1xf32> to vector<3x256xf32>
    %9 = vector.broadcast %7 : vector<1x256xf32> to vector<3x256xf32>
    %10 = arith.mulf %8, %9 : vector<3x256xf32>
    %11 = arith.addf %5, %10 : vector<3x256xf32>
    %12 = vector.extract_strided_slice %0 {offsets = [0, 1], sizes = [3, 1], strides = [1, 1]} : vector<3x4xf32> to vector<3x1xf32>
    %13 = vector.extract_strided_slice %3 {offsets = [1, 0], sizes = [1, 256], strides = [1, 1]} : vector<4x256xf32> to vector<1x256xf32>
    %14 = vector.broadcast %12 : vector<3x1xf32> to vector<3x256xf32>
    %15 = vector.broadcast %13 : vector<1x256xf32> to vector<3x256xf32>
    %16 = arith.mulf %14, %15 : vector<3x256xf32>
    %17 = arith.addf %11, %16 : vector<3x256xf32>
    %18 = vector.extract_strided_slice %0 {offsets = [0, 2], sizes = [3, 1], strides = [1, 1]} : vector<3x4xf32> to vector<3x1xf32>
    %19 = vector.extract_strided_slice %3 {offsets = [2, 0], sizes = [1, 256], strides = [1, 1]} : vector<4x256xf32> to vector<1x256xf32>
    %20 = vector.broadcast %18 : vector<3x1xf32> to vector<3x256xf32>
    %21 = vector.broadcast %19 : vector<1x256xf32> to vector<3x256xf32>
    %22 = arith.mulf %20, %21 : vector<3x256xf32>
    %23 = arith.addf %17, %22 : vector<3x256xf32>
    %24 = vector.extract_strided_slice %0 {offsets = [0, 3], sizes = [3, 1], strides = [1, 1]} : vector<3x4xf32> to vector<3x1xf32>
    %25 = vector.extract_strided_slice %3 {offsets = [3, 0], sizes = [1, 256], strides = [1, 1]} : vector<4x256xf32> to vector<1x256xf32>
    %26 = vector.broadcast %24 : vector<3x1xf32> to vector<3x256xf32>
    %27 = vector.broadcast %25 : vector<1x256xf32> to vector<3x256xf32>
    %28 = arith.mulf %26, %27 : vector<3x256xf32>
    %29 = arith.addf %23, %28 : vector<3x256xf32>
    %c0_6 = arith.constant 0 : index
    %c0_7 = arith.constant 0 : index
    %c0_8 = arith.constant 0 : index
    %30 = vector.load %arg5[%c0_6, %c0_7, %c0_8] : memref<2x3x256xf32, #tpu.memory_space<vmem>>, vector<1x3x256xf32>
    %31 = vector.shape_cast %30 : vector<1x3x256xf32> to vector<3x256xf32>
    %32 = vector.shape_cast %29 : vector<3x256xf32> to vector<1x3x256xf32>
    tpu.vector_store %arg5[%c0_6, %c0_7, %c0_8], %32 {strides = array<i32>} : memref<2x3x256xf32, #tpu.memory_space<vmem>>, vector<1x3x256xf32>,
    %c1 = arith.constant 1 : index
    %c0_9 = arith.constant 0 : index
    %c0_10 = arith.constant 0 : index
    %33 = vector.load %arg2[%c1, %c0_9, %c0_10] : memref<2x4x256xf32, #tpu.memory_space<vmem>>, vector<1x4x256xf32>
    %34 = vector.shape_cast %33 : vector<1x4x256xf32> to vector<4x256xf32>
    %35 = vector.shape_cast %1 : vector<3x1xf32> to vector<3x1xf32>
    %36 = vector.broadcast %35 : vector<3x1xf32> to vector<3x256xf32>
    %37 = vector.extract_strided_slice %0 {offsets = [0, 0], sizes = [3, 1], strides = [1, 1]} : vector<3x4xf32> to vector<3x1xf32>
    %38 = vector.extract_strided_slice %34 {offsets = [0, 0], sizes = [1, 256], strides = [1, 1]} : vector<4x256xf32> to vector<1x256xf32>
    %39 = vector.broadcast %37 : vector<3x1xf32> to vector<3x256xf32>
    %40 = vector.broadcast %38 : vector<1x256xf32> to vector<3x256xf32>
    %41 = arith.mulf %39, %40 : vector<3x256xf32>
    %42 = arith.addf %36, %41 : vector<3x256xf32>
    %43 = vector.extract_strided_slice %0 {offsets = [0, 1], sizes = [3, 1], strides = [1, 1]} : vector<3x4xf32> to vector<3x1xf32>
    %44 = vector.extract_strided_slice %34 {offsets = [1, 0], sizes = [1, 256], strides = [1, 1]} : vector<4x256xf32> to vector<1x256xf32>
    %45 = vector.broadcast %43 : vector<3x1xf32> to vector<3x256xf32>
    %46 = vector.broadcast %44 : vector<1x256xf32> to vector<3x256xf32>
    %47 = arith.mulf %45, %46 : vector<3x256xf32>
    %48 = arith.addf %42, %47 : vector<3x256xf32>
    %49 = vector.extract_strided_slice %0 {offsets = [0, 2], sizes = [3, 1], strides = [1, 1]} : vector<3x4xf32> to vector<3x1xf32>
    %50 = vector.extract_strided_slice %34 {offsets = [2, 0], sizes = [1, 256], strides = [1, 1]} : vector<4x256xf32> to vector<1x256xf32>
    %51 = vector.broadcast %49 : vector<3x1xf32> to vector<3x256xf32>
    %52 = vector.broadcast %50 : vector<1x256xf32> to vector<3x256xf32>
    %53 = arith.mulf %51, %52 : vector<3x256xf32>
    %54 = arith.addf %48, %53 : vector<3x256xf32>
    %55 = vector.extract_strided_slice %0 {offsets = [0, 3], sizes = [3, 1], strides = [1, 1]} : vector<3x4xf32> to vector<3x1xf32>
    %56 = vector.extract_strided_slice %34 {offsets = [3, 0], sizes = [1, 256], strides = [1, 1]} : vector<4x256xf32> to vector<1x256xf32>
    %57 = vector.broadcast %55 : vector<3x1xf32> to vector<3x256xf32>
    %58 = vector.broadcast %56 : vector<1x256xf32> to vector<3x256xf32>
    %59 = arith.mulf %57, %58 : vector<3x256xf32>
    %60 = arith.addf %54, %59 : vector<3x256xf32>
    %c1_11 = arith.constant 1 : index
    %c0_12 = arith.constant 0 : index
    %c0_13 = arith.constant 0 : index
    %61 = vector.load %arg5[%c1_11, %c0_12, %c0_13] : memref<2x3x256xf32, #tpu.memory_space<vmem>>, vector<1x3x256xf32>
    %62 = vector.shape_cast %61 : vector<1x3x256xf32> to vector<3x256xf32>
    %63 = vector.shape_cast %60 : vector<3x256xf32> to vector<1x3x256xf32>
    tpu.vector_store %arg5[%c1_11, %c0_12, %c0_13], %63 {strides = array<i32>} : memref<2x3x256xf32, #tpu.memory_space<vmem>>, vector<1x3x256xf32>,
    return
  }
  func.func @transform_0(%arg0: i32, %arg1: i32) -> (i32, i32, i32) {
    %c0_i32 = arith.constant 0 : i32
    %c0_i32_0 = arith.constant 0 : i32
    return %arg0, %c0_i32, %arg1 : i32, i32, i32
  }
  func.func @transform_1(%arg0: i32, %arg1: i32) -> (i32, i32) {
    %c0_i32 = arith.constant 0 : i32
    %c0_i32_0 = arith.constant 0 : i32
    %c0_i32_1 = arith.constant 0 : i32
    return %c0_i32, %c0_i32_0 : i32, i32
  }
  func.func @transform_2(%arg0: i32, %arg1: i32) -> (i32, i32) {
    %c0_i32 = arith.constant 0 : i32
    %c0_i32_0 = arith.constant 0 : i32
    %c0_i32_1 = arith.constant 0 : i32
    return %c0_i32, %c0_i32_0 : i32, i32
  }
  func.func @transform_3(%arg0: i32, %arg1: i32) -> (i32, i32, i32) {
    %c0_i32 = arith.constant 0 : i32
    %c0_i32_0 = arith.constant 0 : i32
    return %arg0, %c0_i32, %arg1 : i32, i32, i32
  }
}

</mosaic_0001>

<llo_original>
// kernel: tpu_custom_call.1
$region0: #{tpu_custom_call.1}
  #allocation0 [shape = 'u32[]', space=smem, size = 0x4, offset = 0x4, fixed_abs, tag = 'smem constant byte address 0x4 - core index']
  #allocation1 [shape = 'u32[72,128]{1,0:T(1,128)}', space=vmem, size = 0x9000, scoped, tag = 'internal scratch']
  %s0 = inlined_call_operand.hbm [shape: f32[2,4,256], index: 0, kind: input, shape index: {}]
  %s1 = inlined_call_operand.vmem [shape: f32[3,4], index: 1, kind: input, shape index: {}]
  %s2 = inlined_call_operand.vmem [shape: f32[3,1], index: 2, kind: input, shape index: {}]
  %s3 = inlined_call_operand.vmem [shape: f32[2,3,256], index: 3, kind: output, shape index: {}]
  %s4 = sld [smem:[#allocation0]]
  $region26: #{tpu_custom_call.1} parent=0
    _
  %s6 = ssub.s32 1, %s4
  %s7 = scalar_select 0, %s6, %s4
  $region1: #{tpu_custom_call.1} parent=0
    #allocation2 [shape = 'u8[8192]{0}', space=vmem, size = 0x2000, scoped, tag = 'input window, operand 0, single buffered']
    #allocation3 [shape = 's32[1]{0}', space=sflag, size = 0x4, scoped, tag = 'scoped memory for tpu_custom_call.1']
    %8 = vsyncpa [#allocation3], 0
    // Predicated region
    $region2: #{tpu_custom_call.1} parent=1 // pred_check
      _
    $region3: #{tpu_custom_call.1} parent=1 // pred_check_branch
      %10 = sbr.rel (0) target = $region5
    $region4: #{tpu_custom_call.1} parent=1 // pred_region
      %12 = vsyncadd [#allocation3], 0
      %s13 = sshll.u32 %s0, 4
      %s14 = int_to_ptr.hbm [resolvable:$true] %s13
      %s15 = sshll.u32 [#allocation2], 4
      %s16 = int_to_ptr.vmem [resolvable:$true] %s15
      %21 = dma.hbm_to_vmem [thread:$0]  %s14, 256, %s16, [#allocation3], 128, 128, 8
    $region5: #{tpu_custom_call.1} parent=1 // pred_fallthru
      _
    // Predicated region
    $region6: #{tpu_custom_call.1} parent=1 // pred_check
      _
    $region7: #{tpu_custom_call.1} parent=1 // pred_check_branch
      %23 = sbr.rel (0) target = $region9
    $region8: #{tpu_custom_call.1} parent=1 // pred_region
      _
    $region9: #{tpu_custom_call.1} parent=1 // pred_fallthru
      _
    // Predicated region
    $region10: #{tpu_custom_call.1} parent=1 // pred_check
      _
    $region11: #{tpu_custom_call.1} parent=1 // pred_check_branch
      %25 = sbr.rel (0) target = $region13
    $region12: #{tpu_custom_call.1} parent=1 // pred_region
      _
    $region13: #{tpu_custom_call.1} parent=1 // pred_fallthru
      _
    // Predicated region
    $region14: #{tpu_custom_call.1} parent=1 // pred_check
      _
    $region15: #{tpu_custom_call.1} parent=1 // pred_check_branch
      %27 = sbr.rel (0) target = $region17
    $region16: #{tpu_custom_call.1} parent=1 // pred_region
      %29 = dma.done [#allocation3], 256
    $region17: #{tpu_custom_call.1} parent=1 // pred_fallthru
      _
    %v30 = vld [vmem:[%s1] sm:$0x7]
    %v31 = vld [vmem:[%s2] sm:$0x7]
    %v32 = vld [vmem:[#allocation2] sm:$0xff]
    %34 = vset.pattern.permute.xlu0 0
    %35 = vperm.xlu0 %34, %v31
    %v36 = vpop.permute.xlu0 %35
    %39 = vset.pattern.permute.xlu0 0
    %40 = vperm.xlu0 %39, %v30
    %v41 = vpop.permute.xlu0 %40
    %v44 = vperm.slane %v32, 0
    %v45 = vperm.slane %v32, 4
    %v48 = vperm.slane %v44, 0
    %v49 = vperm.slane %v45, 0
    %v50 = vmul.f32 %v41, %v48
    %v51 = vmul.f32 %v41, %v49
    %v52 = vadd.f32 %v36, %v50
    %v53 = vadd.f32 %v36, %v51
    %54 = vset.pattern.permute.xlu0 1
    %55 = vperm.xlu0 %54, %v30
    %v56 = vpop.permute.xlu0 %55
    %v58 = vperm.slane %v32, 1
    %v59 = vperm.slane %v32, 5
    %v62 = vperm.slane %v58, 1
    %v63 = vperm.slane %v59, 1
    %v64 = vmul.f32 %v56, %v62
    %v65 = vmul.f32 %v56, %v63
    %v66 = vadd.f32 %v52, %v64
    %v67 = vadd.f32 %v53, %v65
    %68 = vset.pattern.permute.xlu0 2
    %69 = vperm.xlu0 %68, %v30
    %v70 = vpop.permute.xlu0 %69
    %v72 = vperm.slane %v32, 2
    %v73 = vperm.slane %v32, 6
    %v76 = vperm.slane %v72, 2
    %v77 = vperm.slane %v73, 2
    %v78 = vmul.f32 %v70, %v76
    %v79 = vmul.f32 %v70, %v77
    %v80 = vadd.f32 %v66, %v78
    %v81 = vadd.f32 %v67, %v79
    %82 = vset.pattern.permute.xlu0 3
    %83 = vperm.xlu0 %82, %v30
    %v84 = vpop.permute.xlu0 %83
    %v86 = vperm.slane %v32, 3
    %v87 = vperm.slane %v32, 7
    %v90 = vperm.slane %v86, 3
    %v91 = vperm.slane %v87, 3
    %v92 = vmul.f32 %v84, %v90
    %v93 = vmul.f32 %v84, %v91
    %v94 = vadd.f32 %v80, %v92
    %v95 = vadd.f32 %v81, %v93
    %v98 = vrot.slane %v95, 4
    %vm99 = vcmask 1043456
    %v100 = vsel %vm99, %v94, %v98
    %102 = vst [vmem:[%s3] sm:$0x77] %v100
    %s103 = scalar_lea.vmem [#allocation2], 8
    %v104 = vld [vmem:[%s103] sm:$0xff]
    %v106 = vperm.slane %v104, 0
    %v107 = vperm.slane %v104, 4
    %v110 = vperm.slane %v106, 0
    %v111 = vperm.slane %v107, 0
    %v112 = vmul.f32 %v41, %v110
    %v113 = vmul.f32 %v41, %v111
    %v114 = vadd.f32 %v36, %v112
    %v115 = vadd.f32 %v36, %v113
    %v116 = vperm.slane %v104, 1
    %v117 = vperm.slane %v104, 5
    %v120 = vperm.slane %v116, 1
    %v121 = vperm.slane %v117, 1
    %v122 = vmul.f32 %v56, %v120
    %v123 = vmul.f32 %v56, %v121
    %v124 = vadd.f32 %v114, %v122
    %v125 = vadd.f32 %v115, %v123
    %v126 = vperm.slane %v104, 2
    %v127 = vperm.slane %v104, 6
    %v130 = vperm.slane %v126, 2
    %v131 = vperm.slane %v127, 2
    %v132 = vmul.f32 %v70, %v130
    %v133 = vmul.f32 %v70, %v131
    %v134 = vadd.f32 %v124, %v132
    %v135 = vadd.f32 %v125, %v133
    %v136 = vperm.slane %v104, 3
    %v137 = vperm.slane %v104, 7
    %v140 = vperm.slane %v136, 3
    %v141 = vperm.slane %v137, 3
    %v142 = vmul.f32 %v84, %v140
    %v143 = vmul.f32 %v84, %v141
    %v144 = vadd.f32 %v134, %v142
    %v145 = vadd.f32 %v135, %v143
    %v148 = vrot.slane %v145, 4
    %v149 = vsel %vm99, %v144, %v148
    %s151 = scalar_lea.vmem %s3, 8
    %152 = vst [vmem:[%s151] sm:$0x77] %v149
    // Predicated region
    $region18: #{tpu_custom_call.1} parent=1 // pred_check
      _
    $region19: #{tpu_custom_call.1} parent=1 // pred_check_branch
      %154 = sbr.rel (0) target = $region21
    $region20: #{tpu_custom_call.1} parent=1 // pred_region
      _
    $region21: #{tpu_custom_call.1} parent=1 // pred_fallthru
      _
    // Predicated region
    $region22: #{tpu_custom_call.1} parent=1 // pred_check
      _
    $region23: #{tpu_custom_call.1} parent=1 // pred_check_branch
      %156 = sbr.rel (0) target = $region25
    $region24: #{tpu_custom_call.1} parent=1 // pred_region
      _
    $region25: #{tpu_custom_call.1} parent=1 // pred_fallthru
      _
    %157 = vsyncpa [#allocation3], 1

</llo_original>
